<compile_context>
chip_gen: v5e
topology: v5e:2x2
jax: 0.10.0
libtpu: 0.0.40
codegen_flags: <defaults>
</compile_context>

<pallas_src>
import jax
import jax.numpy as jnp
from jax.experimental import pallas as pl
from jax.experimental.pallas import tpu as pltpu


def _round_up(a: int, b: int) -> int:
    return ((a + b - 1) // b) * b


def _cdiv(a: int, b: int) -> int:
    return (a + b - 1) // b


def _default_tiles():
    """Per-generation (tm, tn) defaults and usable VMEM capacity (per TensorCore)."""
    vmem_cap = 128 * 1024 * 1024
    try:
        vmem_cap = int(pltpu.get_tpu_info().vmem_capacity_bytes)
    except Exception:
        pass
    kind = ""
    try:
        kind = jax.devices()[0].device_kind.lower()
    except Exception:
        pass
    if "v7" in kind or "tpu7" in kind or vmem_cap <= 80 * 1024 * 1024:
        # v7x: 64 MiB/TC; HBM ridge ~311 FLOP/B -> tm=384 already MXU-bound; tn=256 keeps
        # the fused weight tile small enough for double-buffering.
        return 384, 256, min(vmem_cap, 64 * 1024 * 1024)
    if "v5 lite" in kind or "v5e" in kind or "v5lite" in kind:
        # v5e: ridge ~240 FLOP/B, tm=256 is already above the HBM roofline.
        return 256, 512, vmem_cap
    # v6e-class (128 MiB VMEM): ridge ~560 FLOP/B -> larger token tile.
    return 512, 512, vmem_cap


def _choose_tn(hidden: int, tn_max: int):
    """Largest multiple of 128 <= tn_max dividing hidden; else pad hidden to a multiple."""
    tn_max = max(128, min(tn_max, _round_up(hidden, 128)))
    tn_max = (tn_max // 128) * 128
    cand = tn_max
    while cand >= 128:
        if hidden % cand == 0:
            return cand, hidden
        cand -= 128
    return tn_max, _round_up(hidden, tn_max)


def prepare_ffn_weights(w1, w3, w2, *, tn=None, compute_dtype=None):
    """One-time fusion/cast of the FFN weights (hoisted out of the per-call hot path).

    w1, w3: [dim, hidden], w2: [hidden, dim]  (torch Linear.weight.T layout).
    Returns (w13, w2p):
      w13: (kt, dim, 2*tn)  -- hidden tile k is the contiguous slab [w1_k | w3_k]
      w2p: (kt*tn, dim)     -- zero-padded down-projection
    """
    dim, hidden = w1.shape
    assert w3.shape == (dim, hidden) and w2.shape == (hidden, dim)
    if compute_dtype is None:
        compute_dtype = w1.dtype
    if tn is None:
        _, tn, _ = _default_tiles()

    tn_eff, hidden_p = _choose_tn(hidden, tn)
    kt = hidden_p // tn_eff

    w1c = w1.astype(compute_dtype)
    w3c = w3.astype(compute_dtype)
    w2c = w2.astype(compute_dtype)
    if hidden_p != hidden:
        pad = hidden_p - hidden
        # silu(0)*0 == 0 and zero rows of w2 contribute nothing -> padding is exact.
        w1c = jnp.pad(w1c, ((0, 0), (0, pad)))
        w3c = jnp.pad(w3c, ((0, 0), (0, pad)))
        w2c = jnp.pad(w2c, ((0, pad), (0, 0)))

    w13 = jnp.concatenate(
        [w1c.reshape(dim, kt, tn_eff), w3c.reshape(dim, kt, tn_eff)], axis=-1
    )                                              # (dim, kt, 2*tn)
    w13 = jnp.transpose(w13, (1, 0, 2))            # (kt, dim, 2*tn), contiguous per tile
    return w13, w2c


def _ffn_kernel_multi(x_ref, w13_ref, w2_ref, o_ref, acc_ref):
    # x_ref:   (tm, dim)      activation tile (compute dtype)
    # w13_ref: (dim, 2*tn)    fused [w1_k | w3_k] for hidden tile k (leading dim squeezed)
    # w2_ref:  (tn, dim)      down-projection tile for hidden tile k
    # o_ref:   (tm, dim)      output tile, written on the last k
    # acc_ref: (tm, dim) f32  accumulator over the hidden (reduction) axis
    k = pl.program_id(1)
    last = pl.num_programs(1) - 1
    tn = w2_ref.shape[0]

    x = x_ref[...]
    # One wide MXU matmul for gate+up, f32 accumulation.
    h13 = jnp.dot(x, w13_ref[...], preferred_element_type=jnp.float32)  # (tm, 2*tn)
    h1 = h13[:, :tn]
    h3 = h13[:, tn:]
    # SwiGLU gate in f32 (sigmoid goes to the EUP), cast back for the down-proj MXU pass.
    g = (h1 * jax.nn.sigmoid(h1)) * h3
    partial = jnp.dot(g.astype(w2_ref.dtype), w2_ref[...],
                      preferred_element_type=jnp.float32)               # (tm, dim)

    @pl.when(k == 0)
    def _():
        acc_ref[...] = partial                      # store-only (no zero-init + RMW)

    @pl.when(jnp.logical_and(k > 0, k < last))
    def _():
        acc_ref[...] += partial

    @pl.when(k == last)
    def _():
        # Fuse the final accumulate into the output write (skips one f32 RMW of acc).
        o_ref[...] = (acc_ref[...] + partial).astype(o_ref.dtype)


def _ffn_kernel_single(x_ref, w13_ref, w2_ref, o_ref):
    # kt == 1 fast path: no accumulator scratch, direct output write.
    tn = w2_ref.shape[0]
    x = x_ref[...]
    h13 = jnp.dot(x, w13_ref[...], preferred_element_type=jnp.float32)
    h1 = h13[:, :tn]
    h3 = h13[:, tn:]
    g = (h1 * jax.nn.sigmoid(h1)) * h3
    o_ref[...] = jnp.dot(g.astype(w2_ref.dtype), w2_ref[...],
                         preferred_element_type=jnp.float32).astype(o_ref.dtype)


def feed_forward(x, w13, w2, *, tm=None, out_dtype=None, w13_buffers=None):
    """y = (silu(x @ w1) * (x @ w3)) @ w2 with pre-fused weights from prepare_ffn_weights.

    x: [..., dim]; w13: (kt, dim, 2*tn); w2: (kt*tn, dim).
    Matmuls run in the weight dtype (bf16 recommended on v6e/v7x) with f32 accumulation.
    out_dtype defaults to x.dtype (pass jnp.bfloat16 to halve writeback if acceptable).
    """
    kt, dim, two_tn = w13.shape
    tn = two_tn // 2
    hidden_p = w2.shape[0]
    assert hidden_p == kt * tn and w2.shape[1] == dim
    compute_dtype = w13.dtype
    if out_dtype is None:
        out_dtype = x.dtype

    orig_shape = x.shape
    assert orig_shape[-1] == dim
    xf = x.reshape(-1, dim).astype(compute_dtype)
    tokens = xf.shape[0]

    tm_def, _tn_def, vmem_cap = _default_tiles()
    if tm is None:
        tm = tm_def

    # --- balanced token tiling (avoid padding up to the next full tm).
    sub = 16  # sublane-safe for both f32 (8) and bf16 (16)
    n_tiles = _cdiv(tokens, tm)
    tm_eff = _round_up(_cdiv(tokens, n_tiles), sub)

    # --- VMEM budget (per TensorCore), including in-kernel f32 intermediates.
    w_is = jnp.dtype(compute_dtype).itemsize
    o_is = jnp.dtype(out_dtype).itemsize
    n_w13_bufs = w13_buffers if (w13_buffers is not None and w13_buffers > 2) else 2

    def vmem_need(tm_):
        return (2 * tm_ * dim * w_is                 # x double-buffer
                + n_w13_bufs * dim * 2 * tn * w_is   # fused [w1|w3] buffers
                + 2 * tn * dim * w_is                # w2 double-buffer
                + 2 * tm_ * dim * o_is               # output double-buffer
                + (tm_ * dim * 4 if kt > 1 else 0)   # f32 accumulator scratch
                + tm_ * 2 * tn * 4 + tm_ * tn * 4    # h13 / g f32 intermediates
                + 2 * (1 << 20))                     # Mosaic internal scratch headroom

    budget = int(0.8 * vmem_cap)
    while vmem_need(tm_eff) > budget and tm_eff > sub:
        tm_eff = _round_up(tm_eff // 2, sub)

    n_tiles = _cdiv(tokens, tm_eff)
    tokens_pad = n_tiles * tm_eff
    if tokens_pad != tokens:
        xf = jnp.pad(xf, ((0, tokens_pad - tokens), (0, 0)))

    vmem_limit = int(min(max(vmem_need(tm_eff) * 5 // 4, 16 * 1024 * 1024), budget))

    # --- specs
    w13_kwargs = {}
    if w13_buffers is not None and w13_buffers > 2:
        # Deeper buffering on the largest DMA (only if profiling shows exposed DMA).
        w13_kwargs["pipeline_mode"] = pl.Buffered(w13_buffers)

    in_specs = [
        pl.BlockSpec((tm_eff, dim), lambda i, k: (i, 0)),                 # x tile
        pl.BlockSpec((None, dim, 2 * tn), lambda i, k: (k, 0, 0),         # [w1|w3] tile
                     **w13_kwargs),
        pl.BlockSpec((tn, dim), lambda i, k: (k, 0)),                     # w2 tile
    ]
    out_specs = pl.BlockSpec((tm_eff, dim), lambda i, k: (i, 0))

    if kt == 1:
        kernel = _ffn_kernel_single
        scratch = []
    else:
        kernel = _ffn_kernel_multi
        scratch = [pltpu.VMEM((tm_eff, dim), jnp.float32)]

    out = pl.pallas_call(
        kernel,
        out_shape=jax.ShapeDtypeStruct((tokens_pad, dim), out_dtype),
        grid_spec=pltpu.PrefetchScalarGridSpec(
            num_scalar_prefetch=0,
            grid=(n_tiles, kt),                 # token axis parallel, hidden = reduction
            in_specs=in_specs,
            out_specs=out_specs,
            scratch_shapes=scratch,
        ),
        compiler_params=pltpu.CompilerParams(
            dimension_semantics=("parallel", "arbitrary"),
            vmem_limit_bytes=vmem_limit,
        ),
    )(xf, w13, w2)

    if tokens_pad != tokens:
        out = out[:tokens]
    return out.reshape(orig_shape[:-1] + (dim,))


def init_params(key, dim, hidden_dim, init_std=0.02, dtype=jnp.float32):
    # Matches torch init_weights(): w1 uses std=0.02 (hardcoded), w2/w3 use init_std.
    # Weights stored [in, out] ( = torch Linear.weight.T ).
    k1, k2, k3 = jax.random.split(key, 3)
    w1 = (jax.random.truncated_normal(k1, -2.0, 2.0, (dim, hidden_dim)) * 0.02).astype(dtype)
    w3 = (jax.random.truncated_normal(k3, -2.0, 2.0, (dim, hidden_dim)) * init_std).astype(dtype)
    w2 = (jax.random.truncated_normal(k2, -2.0, 2.0, (hidden_dim, dim)) * init_std).astype(dtype)
    return w1, w3, w2


def _reference(x, w1, w3, w2):
    hi = jax.lax.Precision.HIGHEST
    h1 = jnp.dot(x, w1, precision=hi)
    h3 = jnp.dot(x, w3, precision=hi)
    return jnp.dot(h1 * jax.nn.sigmoid(h1) * h3, w2, precision=hi)


if __name__ == "__main__":
    key = jax.random.PRNGKey(0)

    # --- case 1: f32, two hidden tiles (kt=2), tokens=14 exercises the pad/balance path.
    batch, seq, dim, hidden_dim = 2, 7, 256, 512
    kx, kp, kx2, kp2 = jax.random.split(key, 4)
    x = jax.random.normal(kx, (batch, seq, dim), dtype=jnp.float32)
    w1, w3, w2 = init_params(kp, dim, hidden_dim, dtype=jnp.float32)

    w13_f32, w2_f32 = prepare_ffn_weights(w1, w3, w2, tn=256)   # one-time fusion
    y = jax.block_until_ready(feed_forward(x, w13_f32, w2_f32))
    ref = _reference(x, w1, w3, w2)
    assert y.shape == x.shape
    assert jnp.allclose(y, ref, atol=1e-3, rtol=1e-3), float(jnp.max(jnp.abs(y - ref)))

    # --- case 2: bf16 MXU path (f32 accumulation inside the kernel), loose tolerance.
    w13_bf16, w2_bf16 = prepare_ffn_weights(
        w1.astype(jnp.bfloat16), w3.astype(jnp.bfloat16), w2.astype(jnp.bfloat16), tn=256)
    y_bf16 = jax.block_until_ready(feed_forward(x, w13_bf16, w2_bf16))
    assert y_bf16.shape == x.shape and y_bf16.dtype == x.dtype
    assert jnp.allclose(y_bf16.astype(jnp.float32), ref, atol=2e-2, rtol=0.0)

    # --- case 3: hidden not a multiple of 128 -> hidden zero-padded, kt==1 fast path.
    dim2, hidden2 = 128, 192
    x2 = jax.random.normal(kx2, (5, dim2), dtype=jnp.float32)
    w1b, w3b, w2b = init_params(kp2, dim2, hidden2, dtype=jnp.float32)
    w13_b, w2_b = prepare_ffn_weights(w1b, w3b, w2b)
    y2 = jax.block_until_ready(feed_forward(x2, w13_b, w2_b))
    ref2 = _reference(x2, w1b, w3b, w2b)
    assert y2.shape == x2.shape
    assert jnp.allclose(y2, ref2, atol=1e-3, rtol=1e-3), float(jnp.max(jnp.abs(y2 - ref2)))

    print("KERNEL_OK")
</pallas_src>

<mosaic_0001>
module attributes {stable_mosaic.version = 11 : i64} {
  func.func @_ffn_kernel_multi(%arg0: i32, %arg1: i32, %arg2: memref<16x256xf32, #tpu.memory_space<vmem>>, %arg3: memref<1x256x512xf32, #tpu.memory_space<vmem>>, %arg4: memref<256x256xf32, #tpu.memory_space<vmem>>, %arg5: memref<16x256xf32, #tpu.memory_space<vmem>>, %arg6: memref<16x256xf32, #tpu.memory_space<vmem>>) attributes {dimension_semantics = [#tpu.dimension_semantics<parallel>, #tpu.dimension_semantics<arbitrary>], iteration_bounds = array<i64: 1, 2>, scalar_prefetch = 0 : i64, scratch_operands = 1 : i64, tpu.core_type = #tpu.core_type<tc>, window_params = [{transform_indices = @transform_0, window_bounds = array<i64: 16, 256>}, {transform_indices = @transform_1, window_bounds = array<i64: 1, 256, 512>}, {transform_indices = @transform_2, window_bounds = array<i64: 256, 256>}, {transform_indices = @transform_3, window_bounds = array<i64: 16, 256>}]} {
    %c0 = arith.constant 0 : index
    %c0_0 = arith.constant 0 : index
    %0 = vector.load %arg2[%c0, %c0_0] : memref<16x256xf32, #tpu.memory_space<vmem>>, vector<16x256xf32>
    %c0_1 = arith.constant 0 : index
    %c0_2 = arith.constant 0 : index
    %c0_3 = arith.constant 0 : index
    %1 = vector.load %arg3[%c0_1, %c0_2, %c0_3] : memref<1x256x512xf32, #tpu.memory_space<vmem>>, vector<1x256x512xf32>
    %2 = vector.shape_cast %1 : vector<1x256x512xf32> to vector<256x512xf32>
    %cst = arith.constant dense<0.000000e+00> : vector<16x512xf32>
    %3 = tpu.matmul %0, %2, %cst {dimension_numbers = #tpu.dot_dimension_numbers<[1], [0], [0], [1], [0, 0, 1, 1], [], []>} : vector<16x256xf32>, vector<256x512xf32>, vector<16x512xf32> -> vector<16x512xf32>
    %4 = vector.extract_strided_slice %3 {offsets = [0, 0], sizes = [16, 256], strides = [1, 1]} : vector<16x512xf32> to vector<16x256xf32>
    %5 = vector.extract_strided_slice %3 {offsets = [0, 256], sizes = [16, 256], strides = [1, 1]} : vector<16x512xf32> to vector<16x256xf32>
    %6 = arith.negf %4 : vector<16x256xf32>
    %7 = math.exp %6 : vector<16x256xf32>
    %cst_4 = arith.constant 1.000000e+00 : f32
    %8 = vector.broadcast %cst_4 : f32 to vector<16x256xf32>
    %9 = arith.addf %8, %7 : vector<16x256xf32>
    %10 = arith.divf %8, %9 : vector<16x256xf32>
    %11 = arith.mulf %4, %10 : vector<16x256xf32>
    %12 = arith.mulf %11, %5 : vector<16x256xf32>
    %c0_5 = arith.constant 0 : index
    %c0_6 = arith.constant 0 : index
    %13 = vector.load %arg4[%c0_5, %c0_6] : memref<256x256xf32, #tpu.memory_space<vmem>>, vector<256x256xf32>
    %cst_7 = arith.constant dense<0.000000e+00> : vector<16x256xf32>
    %14 = tpu.matmul %12, %13, %cst_7 {dimension_numbers = #tpu.dot_dimension_numbers<[1], [0], [0], [1], [0, 0, 1, 1], [], []>} : vector<16x256xf32>, vector<256x256xf32>, vector<16x256xf32> -> vector<16x256xf32>
    %c0_i32 = arith.constant 0 : i32
    %15 = arith.cmpi eq, %arg1, %c0_i32 : i32
    %16 = arith.extui %15 : i1 to i32
    %c0_i32_8 = arith.constant 0 : i32
    %17 = arith.cmpi ne, %16, %c0_i32_8 : i32
    scf.if %17 {
      %c0_13 = arith.constant 0 : index
      %c0_14 = arith.constant 0 : index
      %26 = vector.load %arg6[%c0_13, %c0_14] : memref<16x256xf32, #tpu.memory_space<vmem>>, vector<16x256xf32>
      tpu.vector_store %arg6[%c0_13, %c0_14], %14 {strides = array<i32>} : memref<16x256xf32, #tpu.memory_space<vmem>>, vector<16x256xf32>,
    } else {
    }
    %c0_i32_9 = arith.constant 0 : i32
    %18 = arith.cmpi sgt, %arg1, %c0_i32_9 : i32
    %c1_i32 = arith.constant 1 : i32
    %19 = arith.cmpi slt, %arg1, %c1_i32 : i32
    %20 = arith.andi %18, %19 : i1
    %21 = arith.extui %20 : i1 to i32
    %c0_i32_10 = arith.constant 0 : i32
    %22 = arith.cmpi ne, %21, %c0_i32_10 : i32
    scf.if %22 {
      %c0_13 = arith.constant 0 : index
      %c0_14 = arith.constant 0 : index
      %26 = vector.load %arg6[%c0_13, %c0_14] : memref<16x256xf32, #tpu.memory_space<vmem>>, vector<16x256xf32>
      %27 = arith.addf %26, %14 : vector<16x256xf32>
      %c0_15 = arith.constant 0 : index
      %c0_16 = arith.constant 0 : index
      %28 = vector.load %arg6[%c0_15, %c0_16] : memref<16x256xf32, #tpu.memory_space<vmem>>, vector<16x256xf32>
      tpu.vector_store %arg6[%c0_15, %c0_16], %27 {strides = array<i32>} : memref<16x256xf32, #tpu.memory_space<vmem>>, vector<16x256xf32>,
    } else {
    }
    %c1_i32_11 = arith.constant 1 : i32
    %23 = arith.cmpi eq, %arg1, %c1_i32_11 : i32
    %24 = arith.extui %23 : i1 to i32
    %c0_i32_12 = arith.constant 0 : i32
    %25 = arith.cmpi ne, %24, %c0_i32_12 : i32
    scf.if %25 {
      %c0_13 = arith.constant 0 : index
      %c0_14 = arith.constant 0 : index
      %26 = vector.load %arg6[%c0_13, %c0_14] : memref<16x256xf32, #tpu.memory_space<vmem>>, vector<16x256xf32>
      %27 = arith.addf %26, %14 : vector<16x256xf32>
      %c0_15 = arith.constant 0 : index
      %c0_16 = arith.constant 0 : index
      %28 = vector.load %arg5[%c0_15, %c0_16] : memref<16x256xf32, #tpu.memory_space<vmem>>, vector<16x256xf32>
      tpu.vector_store %arg5[%c0_15, %c0_16], %27 {strides = array<i32>} : memref<16x256xf32, #tpu.memory_space<vmem>>, vector<16x256xf32>,
    } else {
    }
    return
  }
  func.func @transform_0(%arg0: i32, %arg1: i32) -> (i32, i32) {
    %c0_i32 = arith.constant 0 : i32
    %c0_i32_0 = arith.constant 0 : i32
    return %arg0, %c0_i32 : i32, i32
  }
  func.func @transform_1(%arg0: i32, %arg1: i32) -> (i32, i32, i32) {
    %c0_i32 = arith.constant 0 : i32
    %c0_i32_0 = arith.constant 0 : i32
    %c0_i32_1 = arith.constant 0 : i32
    return %arg1, %c0_i32, %c0_i32_0 : i32, i32, i32
  }
  func.func @transform_2(%arg0: i32, %arg1: i32) -> (i32, i32) {
    %c0_i32 = arith.constant 0 : i32
    %c0_i32_0 = arith.constant 0 : i32
    return %arg1, %c0_i32 : i32, i32
  }
  func.func @transform_3(%arg0: i32, %arg1: i32) -> (i32, i32) {
    %c0_i32 = arith.constant 0 : i32
    %c0_i32_0 = arith.constant 0 : i32
    return %arg0, %c0_i32 : i32, i32
  }
}

</mosaic_0001>

<llo_original>
// kernel: tpu_custom_call.1
$region0: #{tpu_custom_call.1}
  #allocation0 [shape = 'u32[]', space=smem, size = 0x4, offset = 0x4, fixed_abs, tag = 'smem constant byte address 0x4 - core index']
  #allocation1 [shape = 'u32[72,128]{1,0:T(1,128)}', space=vmem, size = 0x9000, scoped, tag = 'internal scratch']
  #allocation2 [shape = 'f32[16,256]{1,0:T(8,128)}', space=vmem, size = 0x4000, scoped, tag = 'scratch operand']
  %s0 = inlined_call_operand.hbm [shape: f32[16,256], index: 0, kind: input, shape index: {}]
  %s1 = inlined_call_operand.hbm [shape: f32[2,256,512], index: 1, kind: input, shape index: {}]
  %s2 = inlined_call_operand.hbm [shape: f32[512,256], index: 2, kind: input, shape index: {}]
  %s3 = inlined_call_operand.hbm [shape: f32[16,256], index: 3, kind: output, shape index: {}]
  %s4 = sld [smem:[#allocation0]]
  $region69: #{tpu_custom_call.1} parent=0
    _
  %s6 = ssub.s32 1, %s4
  %s7 = scalar_select 0, %s6, %s4
  $region1: #{tpu_custom_call.1} parent=0
    #allocation3 [shape = 'u8[16384]{0}', space=vmem, size = 0x4000, scoped, tag = 'input window, operand 0, single buffered']
    #allocation4 [shape = 's32[2]{0}', space=sflag, size = 0x8, scoped, tag = 'scoped memory for tpu_custom_call.1']
    #allocation5 [shape = 's32[2]{0}', space=sflag, size = 0x8, scoped, tag = 'scoped memory for tpu_custom_call.1']
    #allocation6 [shape = 'u8[1048576]{0}', space=vmem, size = 0x100000, scoped, tag = 'input window, operand 1']
    #allocation7 [shape = 's32[2]{0}', space=sflag, size = 0x8, scoped, tag = 'scoped memory for tpu_custom_call.1']
    #allocation8 [shape = 'u8[524288]{0}', space=vmem, size = 0x80000, scoped, tag = 'input window, operand 2']
    #allocation9 [shape = 'u8[16384]{0}', space=vmem, size = 0x4000, scoped, tag = 'output window, operand 0, single buffered']
    %8 = vsyncpa [#allocation4], 0
    %9 = vsyncpa [#allocation7], 0
    %s10 = scalar_lea.sflag [#allocation7], 1
    %11 = vsyncpa %s10, 0
    %12 = vsyncpa [#allocation5], 0
    loop: start=0, step=1, limit=4
    $region2: #{tpu_custom_call.1} parent=1 // loop_pre_header
      _
    $region3: #{tpu_custom_call.1} parent=1 // loop_header
      %s14 = sphi 0, %s18
      %p15 = scmp.ge.s32.totalorder %s14, 4
      %s21 = sphi 0, %s33
      %s22 = sphi 0, %s29
      %s23 = sphi 0, %s21
      %s24 = sphi 0, %s22
      %s25 = sphi 0, %s23
      %s26 = sphi 0, %s24
      %s36 = sphi 0, %s38
      %s39 = sphi 0, %s36
      %s40 = sphi 0, %s39
      %s56 = sphi 0, %s40
      %s62 = sphi 0, %s64
      %s65 = sphi 0, %s62
      %s66 = sphi 0, %s65
      %s82 = sphi 0, %s66
      %s88 = sphi 0, %s90
      %s91 = sphi 0, %s88
      %s92 = sphi 0, %s91
      %s108 = sphi 0, %s92
      %s114 = sphi 0, %s116
      %s117 = sphi 0, %s114
      %s118 = sphi 0, %s117
      %s134 = sphi 0, %s118
    $region4: #{tpu_custom_call.1} parent=1 // loop_header_branch
      %17 = sbr.rel (%p15) target = $region8
    $region5: #{tpu_custom_call.1} parent=1 // loop_body
      %s19 = ssub.s32 %s14, 1
      %s20 = ssub.s32 %s14, 2
      %s27 = sadd.s32 1, %s22
      %p28 = scmp.ge.s32.totalorder %s27, 2
      %s29 = scalar_select %p28, 0, %s27
      %s30 = sadd.s32 1, %s21
      %s31 = scalar_select %p28, %s30, %s21
      %p32 = scmp.ge.s32.totalorder %s31, 1
      %s33 = scalar_select %p32, 0, %s31
      %s34 = ssub.s32 %s21, %s33
      %p35 = scmp.eq.s32.totalorder %s34, 0
      %s37 = sadd.s32 %s36, 1
      %s38 = scalar_select %p35, %s36, %s37
      %p41 = pneg %p35
      %p42 = scmp.eq.s32.totalorder %s14, 1
      %p43 = por %p41, %p42
      %p44 = scmp.ne.s32.totalorder %s36, %s39
      %p45 = scmp.eq.s32.totalorder %s14, 0
      %p46 = por %p44, %p45
      %p47 = scmp.ne.s32.totalorder %s36, %s39
      %p48 = scmp.eq.s32.totalorder %s19, 1
      %p49 = por %p47, %p48
      %p50 = scmp.ne.s32.totalorder %s39, %s40
      %p51 = scmp.eq.s32.totalorder %s19, 0
      %p52 = por %p50, %p51
      %p53 = scmp.ne.s32.totalorder %s39, %s40
      %p54 = scmp.eq.s32.totalorder %s20, 1
      %p55 = por %p53, %p54
      %p57 = scmp.ne.s32.totalorder %s40, %s56
      %p58 = scmp.eq.s32.totalorder %s20, 0
      %p59 = por %p57, %p58
      %s60 = ssub.s32 %s22, %s29
      %p61 = scmp.eq.s32.totalorder %s60, 0
      %s63 = sadd.s32 %s62, 1
      %s64 = scalar_select %p61, %s62, %s63
      %p67 = pneg %p61
      %p68 = scmp.eq.s32.totalorder %s14, 1
      %p69 = por %p67, %p68
      %p70 = scmp.ne.s32.totalorder %s62, %s65
      %p71 = scmp.eq.s32.totalorder %s14, 0
      %p72 = por %p70, %p71
      %p73 = scmp.ne.s32.totalorder %s62, %s65
      %p74 = scmp.eq.s32.totalorder %s19, 1
      %p75 = por %p73, %p74
      %p76 = scmp.ne.s32.totalorder %s65, %s66
      %p77 = scmp.eq.s32.totalorder %s19, 0
      %p78 = por %p76, %p77
      %p79 = scmp.ne.s32.totalorder %s65, %s66
      %p80 = scmp.eq.s32.totalorder %s20, 1
      %p81 = por %p79, %p80
      %p83 = scmp.ne.s32.totalorder %s66, %s82
      %p84 = scmp.eq.s32.totalorder %s20, 0
      %p85 = por %p83, %p84
      %s86 = ssub.s32 %s22, %s29
      %p87 = scmp.eq.s32.totalorder %s86, 0
      %s89 = sadd.s32 %s88, 1
      %s90 = scalar_select %p87, %s88, %s89
      %p93 = pneg %p87
      %p94 = scmp.eq.s32.totalorder %s14, 1
      %p95 = por %p93, %p94
      %p96 = scmp.ne.s32.totalorder %s88, %s91
      %p97 = scmp.eq.s32.totalorder %s14, 0
      %p98 = por %p96, %p97
      %p99 = scmp.ne.s32.totalorder %s88, %s91
      %p100 = scmp.eq.s32.totalorder %s19, 1
      %p101 = por %p99, %p100
      %p102 = scmp.ne.s32.totalorder %s91, %s92
      %p103 = scmp.eq.s32.totalorder %s19, 0
      %p104 = por %p102, %p103
      %p105 = scmp.ne.s32.totalorder %s91, %s92
      %p106 = scmp.eq.s32.totalorder %s20, 1
      %p107 = por %p105, %p106
      %p109 = scmp.ne.s32.totalorder %s92, %s108
      %p110 = scmp.eq.s32.totalorder %s20, 0
      %p111 = por %p109, %p110
      %s112 = ssub.s32 %s21, %s33
      %p113 = scmp.eq.s32.totalorder %s112, 0
      %s115 = sadd.s32 %s114, 1
      %s116 = scalar_select %p113, %s114, %s115
      %p119 = pneg %p113
      %p120 = scmp.eq.s32.totalorder %s14, 1
      %p121 = por %p119, %p120
      %p122 = scmp.ne.s32.totalorder %s114, %s117
      %p123 = scmp.eq.s32.totalorder %s14, 0
      %p124 = por %p122, %p123
      %p125 = scmp.ne.s32.totalorder %s114, %s117
      %p126 = scmp.eq.s32.totalorder %s19, 1
      %p127 = por %p125, %p126
      %p128 = scmp.ne.s32.totalorder %s117, %s118
      %p129 = scmp.eq.s32.totalorder %s19, 0
      %p130 = por %p128, %p129
      %p131 = scmp.ne.s32.totalorder %s117, %s118
      %p132 = scmp.eq.s32.totalorder %s20, 1
      %p133 = por %p131, %p132
      %p135 = scmp.ne.s32.totalorder %s118, %s134
      %p136 = scmp.eq.s32.totalorder %s20, 0
      %p137 = por %p135, %p136
      %p138 = scmp.le.s32.totalorder 1, %s14
      %p139 = scmp.lt.s32.totalorder %s14, 3
      %p140 = pnand %p138, %p139
      %p141 = pneg %p140
      // Predicated region
      $region9: #{tpu_custom_call.1} parent=5 // pred_check
        _
      $region10: #{tpu_custom_call.1} parent=5 // pred_check_branch
        %143 = sbr.rel (%p140) target = $region12
      $region11: #{tpu_custom_call.1} parent=5 // pred_region
        %s144 = ssub.s32 %s14, 1
        // Predicated region
        $region13: #{tpu_custom_call.1} parent=11 // pred_check
          %p145 = pneg %p52
        $region14: #{tpu_custom_call.1} parent=11 // pred_check_branch
          %147 = sbr.rel (%p145) target = $region16
        $region15: #{tpu_custom_call.1} parent=11 // pred_region
          %s148 = smul.u32 2, %s23
          %150 = vsyncadd [#allocation4], 0
          %s151 = smul.addr %s148, 2
          %s152 = smul.addr %s151, 8
          %s153 = scalar_lea.hbm %s0, %s152
          %s154 = sshll.u32 %s153, 4
          %s155 = int_to_ptr.hbm [resolvable:$true] %s154
          %s156 = sshll.u32 [#allocation3], 4
          %s157 = int_to_ptr.vmem [resolvable:$true] %s156
          %162 = dma.hbm_to_vmem [thread:$0]  %s155, 512, %s157, [#allocation4], 256, 256, 16
        $region16: #{tpu_custom_call.1} parent=11 // pred_fallthru
          _
      $region12: #{tpu_custom_call.1} parent=5 // pred_fallthru
        _
      %p163 = scmp.lt.s32.totalorder %s14, 2
      // Predicated region
      $region17: #{tpu_custom_call.1} parent=5 // pred_check
        %p164 = pneg %p163
      $region18: #{tpu_custom_call.1} parent=5 // pred_check_branch
        %166 = sbr.rel (%p164) target = $region20
      $region19: #{tpu_custom_call.1} parent=5 // pred_region
        // Predicated region
        $region21: #{tpu_custom_call.1} parent=19 // pred_check
          %p167 = pneg %p72
        $region22: #{tpu_custom_call.1} parent=19 // pred_check_branch
          %169 = sbr.rel (%p167) target = $region24
        $region23: #{tpu_custom_call.1} parent=19 // pred_region
          %s170 = sand.u32 %s14, 1
          %s171 = scalar_lea.sflag [#allocation7], %s170
          %s172 = sand.u32 %s62, 1
          %s173 = smul.addr %s172, 1024
          %s174 = scalar_lea.vmem [#allocation6], %s173
          %176 = vsyncadd %s171, 0
          %s177 = smul.addr %s22, 128
          %s178 = smul.addr %s177, 8
          %s179 = scalar_lea.hbm %s1, %s178
          %s180 = sshll.u32 %s179, 4
          %s181 = int_to_ptr.hbm [resolvable:$true] %s180
          %s182 = sshll.u32 %s174, 4
          %s183 = int_to_ptr.vmem [resolvable:$true] %s182
          %188 = dma.hbm_to_vmem [thread:$0]  %s181, 16384, %s183, %s171, 512, 512, 32
        $region24: #{tpu_custom_call.1} parent=19 // pred_fallthru
          _
        // Predicated region
        $region25: #{tpu_custom_call.1} parent=19 // pred_check
          %p189 = pneg %p98
        $region26: #{tpu_custom_call.1} parent=19 // pred_check_branch
          %191 = sbr.rel (%p189) target = $region28
        $region27: #{tpu_custom_call.1} parent=19 // pred_region
          %s192 = sand.u32 %s14, 1
          %s193 = scalar_lea.sflag [#allocation7], %s192
          %s194 = sand.u32 %s88, 1
          %s195 = smul.addr %s194, 512
          %s196 = scalar_lea.vmem [#allocation8], %s195
          %s197 = smul.u32 32, %s22
          %199 = vsyncadd %s193, 0
          %s200 = smul.addr %s197, 2
          %s201 = smul.addr %s200, 8
          %s202 = scalar_lea.hbm %s2, %s201
          %s203 = sshll.u32 %s202, 4
          %s204 = int_to_ptr.hbm [resolvable:$true] %s203
          %s205 = sshll.u32 %s196, 4
          %s206 = int_to_ptr.vmem [resolvable:$true] %s205
          %211 = dma.hbm_to_vmem [thread:$0]  %s204, 8192, %s206, %s193, 256, 256, 16
        $region28: #{tpu_custom_call.1} parent=19 // pred_fallthru
          _
      $region20: #{tpu_custom_call.1} parent=5 // pred_fallthru
        _
      %p212 = scmp.le.s32.totalorder 1, %s14
      %p213 = scmp.lt.s32.totalorder %s14, 3
      %p214 = pnand %p212, %p213
      %p215 = pneg %p214
      // Predicated region
      $region29: #{tpu_custom_call.1} parent=5 // pred_check
        _
      $region30: #{tpu_custom_call.1} parent=5 // pred_check_branch
        %217 = sbr.rel (%p214) target = $region32
      $region31: #{tpu_custom_call.1} parent=5 // pred_region
        %s218 = ssub.s32 %s14, 1
        // Predicated region
        $region33: #{tpu_custom_call.1} parent=31 // pred_check
          %p219 = pneg %p52
        $region34: #{tpu_custom_call.1} parent=31 // pred_check_branch
          %221 = sbr.rel (%p219) target = $region36
        $region35: #{tpu_custom_call.1} parent=31 // pred_region
          %223 = dma.done [#allocation4], 512
        $region36: #{tpu_custom_call.1} parent=31 // pred_fallthru
          _
        %s224 = sand.u32 %s19, 1
        %s225 = scalar_lea.sflag [#allocation7], %s224
        %s226 = sand.u32 %s65, 1
        %s227 = smul.addr %s226, 1024
        %s228 = scalar_lea.vmem [#allocation6], %s227
        // Predicated region
        $region37: #{tpu_custom_call.1} parent=31 // pred_check
          %p229 = pneg %p78
        $region38: #{tpu_custom_call.1} parent=31 // pred_check_branch
          %231 = sbr.rel (%p229) target = $region40
        $region39: #{tpu_custom_call.1} parent=31 // pred_region
          %233 = dma.done %s225, 16384
        $region40: #{tpu_custom_call.1} parent=31 // pred_fallthru
          _
        %s234 = sand.u32 %s19, 1
        %s235 = scalar_lea.sflag [#allocation7], %s234
        %s236 = sand.u32 %s91, 1
        %s237 = smul.addr %s236, 512
        %s238 = scalar_lea.vmem [#allocation8], %s237
        // Predicated region
        $region41: #{tpu_custom_call.1} parent=31 // pred_check
          %p239 = pneg %p104
        $region42: #{tpu_custom_call.1} parent=31 // pred_check_branch
          %241 = sbr.rel (%p239) target = $region44
        $region43: #{tpu_custom_call.1} parent=31 // pred_region
          %243 = dma.done %s235, 8192
        $region44: #{tpu_custom_call.1} parent=31 // pred_fallthru
          _
        %p244 = pneg %p52
        %p245 = pneg %p49
        %s246 = sand.u32 %s19, 1
        %s247 = scalar_lea.sflag [#allocation7], %s246
        %s248 = sand.u32 %s65, 1
        %s249 = smul.addr %s248, 1024
        %s250 = scalar_lea.vmem [#allocation6], %s249
        %p251 = pneg %p78
        %p252 = pneg %p75
        %s253 = sand.u32 %s19, 1
        %s254 = scalar_lea.sflag [#allocation7], %s253
        %s255 = sand.u32 %s91, 1
        %s256 = smul.addr %s255, 512
        %s257 = scalar_lea.vmem [#allocation8], %s256
        %p258 = pneg %p104
        %p259 = pneg %p101
        %p260 = pneg %p130
        %p261 = pneg %p127
        %s262 = smul.u32 2, %s23
        %s263 = smul.u32 32, %s24
        %s264 = smul.u32 2, %s23
        %v265 = vld [vmem:[#allocation3] sm:$0xff]
        %v266 = vld [vmem:[#allocation3 + $0x8] sm:$0xff]
        %v267 = vld [vmem:[#allocation3 + $0x10] sm:$0xff]
        %v268 = vld [vmem:[#allocation3 + $0x18] sm:$0xff]
        %v269 = vld [vmem:[%s228] sm:$0xff]
        %v270 = vld [vmem:[%s228 + $0x8] sm:$0xff]
        %v271 = vld [vmem:[%s228 + $0x10] sm:$0xff]
        %v272 = vld [vmem:[%s228 + $0x18] sm:$0xff]
        %v273 = vld [vmem:[%s228 + $0x20] sm:$0xff]
        %v274 = vld [vmem:[%s228 + $0x28] sm:$0xff]
        %v275 = vld [vmem:[%s228 + $0x30] sm:$0xff]
        %v276 = vld [vmem:[%s228 + $0x38] sm:$0xff]
        %v277 = vld [vmem:[%s228 + $0x40] sm:$0xff]
        %v278 = vld [vmem:[%s228 + $0x48] sm:$0xff]
        %v279 = vld [vmem:[%s228 + $0x50] sm:$0xff]
        %v280 = vld [vmem:[%s228 + $0x58] sm:$0xff]
        %v281 = vld [vmem:[%s228 + $0x60] sm:$0xff]
        %v282 = vld [vmem:[%s228 + $0x68] sm:$0xff]
        %v283 = vld [vmem:[%s228 + $0x70] sm:$0xff]
        %v284 = vld [vmem:[%s228 + $0x78] sm:$0xff]
        %v285 = vld [vmem:[%s228 + $0x80] sm:$0xff]
        %v286 = vld [vmem:[%s228 + $0x88] sm:$0xff]
        %v287 = vld [vmem:[%s228 + $0x90] sm:$0xff]
        %v288 = vld [vmem:[%s228 + $0x98] sm:$0xff]
        %v289 = vld [vmem:[%s228 + $0xa0] sm:$0xff]
        %v290 = vld [vmem:[%s228 + $0xa8] sm:$0xff]
        %v291 = vld [vmem:[%s228 + $0xb0] sm:$0xff]
        %v292 = vld [vmem:[%s228 + $0xb8] sm:$0xff]
        %v293 = vld [vmem:[%s228 + $0xc0] sm:$0xff]
        %v294 = vld [vmem:[%s228 + $0xc8] sm:$0xff]
        %v295 = vld [vmem:[%s228 + $0xd0] sm:$0xff]
        %v296 = vld [vmem:[%s228 + $0xd8] sm:$0xff]
        %v297 = vld [vmem:[%s228 + $0xe0] sm:$0xff]
        %v298 = vld [vmem:[%s228 + $0xe8] sm:$0xff]
        %v299 = vld [vmem:[%s228 + $0xf0] sm:$0xff]
        %v300 = vld [vmem:[%s228 + $0xf8] sm:$0xff]
        %v301 = vld [vmem:[%s228 + $0x100] sm:$0xff]
        %v302 = vld [vmem:[%s228 + $0x108] sm:$0xff]
        %v303 = vld [vmem:[%s228 + $0x110] sm:$0xff]
        %v304 = vld [vmem:[%s228 + $0x118] sm:$0xff]
        %v305 = vld [vmem:[%s228 + $0x120] sm:$0xff]
        %v306 = vld [vmem:[%s228 + $0x128] sm:$0xff]
        %v307 = vld [vmem:[%s228 + $0x130] sm:$0xff]
        %v308 = vld [vmem:[%s228 + $0x138] sm:$0xff]
        %v309 = vld [vmem:[%s228 + $0x140] sm:$0xff]
        %v310 = vld [vmem:[%s228 + $0x148] sm:$0xff]
        %v311 = vld [vmem:[%s228 + $0x150] sm:$0xff]
        %v312 = vld [vmem:[%s228 + $0x158] sm:$0xff]
        %v313 = vld [vmem:[%s228 + $0x160] sm:$0xff]
        %v314 = vld [vmem:[%s228 + $0x168] sm:$0xff]
        %v315 = vld [vmem:[%s228 + $0x170] sm:$0xff]
        %v316 = vld [vmem:[%s228 + $0x178] sm:$0xff]
        %v317 = vld [vmem:[%s228 + $0x180] sm:$0xff]
        %v318 = vld [vmem:[%s228 + $0x188] sm:$0xff]
        %v319 = vld [vmem:[%s228 + $0x190] sm:$0xff]
        %v320 = vld [vmem:[%s228 + $0x198] sm:$0xff]
        %v321 = vld [vmem:[%s228 + $0x1a0] sm:$0xff]
        %v322 = vld [vmem:[%s228 + $0x1a8] sm:$0xff]
        %v323 = vld [vmem:[%s228 + $0x1b0] sm:$0xff]
        %v324 = vld [vmem:[%s228 + $0x1b8] sm:$0xff]
        %v325 = vld [vmem:[%s228 + $0x1c0] sm:$0xff]
        %v326 = vld [vmem:[%s228 + $0x1c8] sm:$0xff]
        %v327 = vld [vmem:[%s228 + $0x1d0] sm:$0xff]
        %v328 = vld [vmem:[%s228 + $0x1d8] sm:$0xff]
        %v329 = vld [vmem:[%s228 + $0x1e0] sm:$0xff]
        %v330 = vld [vmem:[%s228 + $0x1e8] sm:$0xff]
        %v331 = vld [vmem:[%s228 + $0x1f0] sm:$0xff]
        %v332 = vld [vmem:[%s228 + $0x1f8] sm:$0xff]
        %v333 = vld [vmem:[%s228 + $0x200] sm:$0xff]
        %v334 = vld [vmem:[%s228 + $0x208] sm:$0xff]
        %v335 = vld [vmem:[%s228 + $0x210] sm:$0xff]
        %v336 = vld [vmem:[%s228 + $0x218] sm:$0xff]
        %v337 = vld [vmem:[%s228 + $0x220] sm:$0xff]
        %v338 = vld [vmem:[%s228 + $0x228] sm:$0xff]
        %v339 = vld [vmem:[%s228 + $0x230] sm:$0xff]
        %v340 = vld [vmem:[%s228 + $0x238] sm:$0xff]
        %v341 = vld [vmem:[%s228 + $0x240] sm:$0xff]
        %v342 = vld [vmem:[%s228 + $0x248] sm:$0xff]
        %v343 = vld [vmem:[%s228 + $0x250] sm:$0xff]
        %v344 = vld [vmem:[%s228 + $0x258] sm:$0xff]
        %v345 = vld [vmem:[%s228 + $0x260] sm:$0xff]
        %v346 = vld [vmem:[%s228 + $0x268] sm:$0xff]
        %v347 = vld [vmem:[%s228 + $0x270] sm:$0xff]
        %v348 = vld [vmem:[%s228 + $0x278] sm:$0xff]
        %v349 = vld [vmem:[%s228 + $0x280] sm:$0xff]
        %v350 = vld [vmem:[%s228 + $0x288] sm:$0xff]
        %v351 = vld [vmem:[%s228 + $0x290] sm:$0xff]
        %v352 = vld [vmem:[%s228 + $0x298] sm:$0xff]
        %v353 = vld [vmem:[%s228 + $0x2a0] sm:$0xff]
        %v354 = vld [vmem:[%s228 + $0x2a8] sm:$0xff]
        %v355 = vld [vmem:[%s228 + $0x2b0] sm:$0xff]
        %v356 = vld [vmem:[%s228 + $0x2b8] sm:$0xff]
        %v357 = vld [vmem:[%s228 + $0x2c0] sm:$0xff]
        %v358 = vld [vmem:[%s228 + $0x2c8] sm:$0xff]
        %v359 = vld [vmem:[%s228 + $0x2d0] sm:$0xff]
        %v360 = vld [vmem:[%s228 + $0x2d8] sm:$0xff]
        %v361 = vld [vmem:[%s228 + $0x2e0] sm:$0xff]
        %v362 = vld [vmem:[%s228 + $0x2e8] sm:$0xff]
        %v363 = vld [vmem:[%s228 + $0x2f0] sm:$0xff]
        %v364 = vld [vmem:[%s228 + $0x2f8] sm:$0xff]
        %v365 = vld [vmem:[%s228 + $0x300] sm:$0xff]
        %v366 = vld [vmem:[%s228 + $0x308] sm:$0xff]
        %v367 = vld [vmem:[%s228 + $0x310] sm:$0xff]
        %v368 = vld [vmem:[%s228 + $0x318] sm:$0xff]
        %v369 = vld [vmem:[%s228 + $0x320] sm:$0xff]
        %v370 = vld [vmem:[%s228 + $0x328] sm:$0xff]
        %v371 = vld [vmem:[%s228 + $0x330] sm:$0xff]
        %v372 = vld [vmem:[%s228 + $0x338] sm:$0xff]
        %v373 = vld [vmem:[%s228 + $0x340] sm:$0xff]
        %v374 = vld [vmem:[%s228 + $0x348] sm:$0xff]
        %v375 = vld [vmem:[%s228 + $0x350] sm:$0xff]
        %v376 = vld [vmem:[%s228 + $0x358] sm:$0xff]
        %v377 = vld [vmem:[%s228 + $0x360] sm:$0xff]
        %v378 = vld [vmem:[%s228 + $0x368] sm:$0xff]
        %v379 = vld [vmem:[%s228 + $0x370] sm:$0xff]
        %v380 = vld [vmem:[%s228 + $0x378] sm:$0xff]
        %v381 = vld [vmem:[%s228 + $0x380] sm:$0xff]
        %v382 = vld [vmem:[%s228 + $0x388] sm:$0xff]
        %v383 = vld [vmem:[%s228 + $0x390] sm:$0xff]
        %v384 = vld [vmem:[%s228 + $0x398] sm:$0xff]
        %v385 = vld [vmem:[%s228 + $0x3a0] sm:$0xff]
        %v386 = vld [vmem:[%s228 + $0x3a8] sm:$0xff]
        %v387 = vld [vmem:[%s228 + $0x3b0] sm:$0xff]
        %v388 = vld [vmem:[%s228 + $0x3b8] sm:$0xff]
        %v389 = vld [vmem:[%s228 + $0x3c0] sm:$0xff]
        %v390 = vld [vmem:[%s228 + $0x3c8] sm:$0xff]
        %v391 = vld [vmem:[%s228 + $0x3d0] sm:$0xff]
        %v392 = vld [vmem:[%s228 + $0x3d8] sm:$0xff]
        %v393 = vld [vmem:[%s228 + $0x3e0] sm:$0xff]
        %v394 = vld [vmem:[%s228 + $0x3e8] sm:$0xff]
        %v395 = vld [vmem:[%s228 + $0x3f0] sm:$0xff]
        %v396 = vld [vmem:[%s228 + $0x3f8] sm:$0xff]
        %397 = vmatpush.msra.mxu0 %v329
        %398 = vmatpush.msra.mxu0 %v325
        %399 = vmatpush.msra.mxu0 %v321
        %400 = vmatpush.msra.mxu0 %v317
        %401 = vmatpush.msra.mxu0 %v313
        %402 = vmatpush.msra.mxu0 %v309
        %403 = vmatpush.msra.mxu0 %v305
        %404 = vmatpush.msra.mxu0 %v301
        %405 = vmatpush.msra.mxu0 %v297
        %406 = vmatpush.msra.mxu0 %v293
        %407 = vmatpush.msra.mxu0 %v289
        %408 = vmatpush.msra.mxu0 %v285
        %409 = vmatpush.msra.mxu0 %v281
        %410 = vmatpush.msra.mxu0 %v277
        %411 = vmatpush.msra.mxu0 %v273
        %412 = vmatpush.msra.mxu0 %v269
        %413 = vmatmul.f32.gmra.mxu0 %v265
        %v414 = vpop.f32.mrf.mxu0
        %v415 = vadd.f32 0.0, %v414
        %416 = vmatmul.f32.gmra.mxu0 %v267
        %v417 = vpop.f32.mrf.mxu0
        %v418 = vadd.f32 0.0, %v417
        %419 = vdwg.mxu0
        %420 = vmatpush.msra.mxu0 %v393
        %421 = vmatpush.msra.mxu0 %v389
        %422 = vmatpush.msra.mxu0 %v385
        %423 = vmatpush.msra.mxu0 %v381
        %424 = vmatpush.msra.mxu0 %v377
        %425 = vmatpush.msra.mxu0 %v373
        %426 = vmatpush.msra.mxu0 %v369
        %427 = vmatpush.msra.mxu0 %v365
        %428 = vmatpush.msra.mxu0 %v361
        %429 = vmatpush.msra.mxu0 %v357
        %430 = vmatpush.msra.mxu0 %v353
        %431 = vmatpush.msra.mxu0 %v349
        %432 = vmatpush.msra.mxu0 %v345
        %433 = vmatpush.msra.mxu0 %v341
        %434 = vmatpush.msra.mxu0 %v337
        %435 = vmatpush.msra.mxu0 %v333
        %436 = vmatmul.f32.gmra.mxu0 %v266
        %v437 = vpop.f32.mrf.mxu0
        %v438 = vadd.f32 %v415, %v437
        %439 = vmatmul.f32.gmra.mxu0 %v268
        %v440 = vpop.f32.mrf.mxu0
        %v441 = vadd.f32 %v418, %v440
        %442 = vdwg.mxu0
        %443 = vmatpush.msra.mxu0 %v330
        %444 = vmatpush.msra.mxu0 %v326
        %445 = vmatpush.msra.mxu0 %v322
        %446 = vmatpush.msra.mxu0 %v318
        %447 = vmatpush.msra.mxu0 %v314
        %448 = vmatpush.msra.mxu0 %v310
        %449 = vmatpush.msra.mxu0 %v306
        %450 = vmatpush.msra.mxu0 %v302
        %451 = vmatpush.msra.mxu0 %v298
        %452 = vmatpush.msra.mxu0 %v294
        %453 = vmatpush.msra.mxu0 %v290
        %454 = vmatpush.msra.mxu0 %v286
        %455 = vmatpush.msra.mxu0 %v282
        %456 = vmatpush.msra.mxu0 %v278
        %457 = vmatpush.msra.mxu0 %v274
        %458 = vmatpush.msra.mxu0 %v270
        %459 = vmatmul.f32.gmra.mxu0 %v265
        %v460 = vpop.f32.mrf.mxu0
        %v461 = vadd.f32 0.0, %v460
        %462 = vmatmul.f32.gmra.mxu0 %v267
        %v463 = vpop.f32.mrf.mxu0
        %v464 = vadd.f32 0.0, %v463
        %465 = vdwg.mxu0
        %466 = vmatpush.msra.mxu0 %v394
        %467 = vmatpush.msra.mxu0 %v390
        %468 = vmatpush.msra.mxu0 %v386
        %469 = vmatpush.msra.mxu0 %v382
        %470 = vmatpush.msra.mxu0 %v378
        %471 = vmatpush.msra.mxu0 %v374
        %472 = vmatpush.msra.mxu0 %v370
        %473 = vmatpush.msra.mxu0 %v366
        %474 = vmatpush.msra.mxu0 %v362
        %475 = vmatpush.msra.mxu0 %v358
        %476 = vmatpush.msra.mxu0 %v354
        %477 = vmatpush.msra.mxu0 %v350
        %478 = vmatpush.msra.mxu0 %v346
        %479 = vmatpush.msra.mxu0 %v342
        %480 = vmatpush.msra.mxu0 %v338
        %481 = vmatpush.msra.mxu0 %v334
        %482 = vmatmul.f32.gmra.mxu0 %v266
        %v483 = vpop.f32.mrf.mxu0
        %v484 = vadd.f32 %v461, %v483
        %485 = vmatmul.f32.gmra.mxu0 %v268
        %v486 = vpop.f32.mrf.mxu0
        %v487 = vadd.f32 %v464, %v486
        %488 = vdwg.mxu0
        %489 = vmatpush.msra.mxu0 %v331
        %490 = vmatpush.msra.mxu0 %v327
        %491 = vmatpush.msra.mxu0 %v323
        %492 = vmatpush.msra.mxu0 %v319
        %493 = vmatpush.msra.mxu0 %v315
        %494 = vmatpush.msra.mxu0 %v311
        %495 = vmatpush.msra.mxu0 %v307
        %496 = vmatpush.msra.mxu0 %v303
        %497 = vmatpush.msra.mxu0 %v299
        %498 = vmatpush.msra.mxu0 %v295
        %499 = vmatpush.msra.mxu0 %v291
        %500 = vmatpush.msra.mxu0 %v287
        %501 = vmatpush.msra.mxu0 %v283
        %502 = vmatpush.msra.mxu0 %v279
        %503 = vmatpush.msra.mxu0 %v275
        %504 = vmatpush.msra.mxu0 %v271
        %505 = vmatmul.f32.gmra.mxu0 %v265
        %v506 = vpop.f32.mrf.mxu0
        %v507 = vadd.f32 0.0, %v506
        %508 = vmatmul.f32.gmra.mxu0 %v267
        %v509 = vpop.f32.mrf.mxu0
        %v510 = vadd.f32 0.0, %v509
        %511 = vdwg.mxu0
        %512 = vmatpush.msra.mxu0 %v395
        %513 = vmatpush.msra.mxu0 %v391
        %514 = vmatpush.msra.mxu0 %v387
        %515 = vmatpush.msra.mxu0 %v383
        %516 = vmatpush.msra.mxu0 %v379
        %517 = vmatpush.msra.mxu0 %v375
        %518 = vmatpush.msra.mxu0 %v371
        %519 = vmatpush.msra.mxu0 %v367
        %520 = vmatpush.msra.mxu0 %v363
        %521 = vmatpush.msra.mxu0 %v359
        %522 = vmatpush.msra.mxu0 %v355
        %523 = vmatpush.msra.mxu0 %v351
        %524 = vmatpush.msra.mxu0 %v347
        %525 = vmatpush.msra.mxu0 %v343
        %526 = vmatpush.msra.mxu0 %v339
        %527 = vmatpush.msra.mxu0 %v335
        %528 = vmatmul.f32.gmra.mxu0 %v266
        %v529 = vpop.f32.mrf.mxu0
        %v530 = vadd.f32 %v507, %v529
        %531 = vmatmul.f32.gmra.mxu0 %v268
        %v532 = vpop.f32.mrf.mxu0
        %v533 = vadd.f32 %v510, %v532
        %534 = vdwg.mxu0
        %535 = vmatpush.msra.mxu0 %v332
        %536 = vmatpush.msra.mxu0 %v328
        %537 = vmatpush.msra.mxu0 %v324
        %538 = vmatpush.msra.mxu0 %v320
        %539 = vmatpush.msra.mxu0 %v316
        %540 = vmatpush.msra.mxu0 %v312
        %541 = vmatpush.msra.mxu0 %v308
        %542 = vmatpush.msra.mxu0 %v304
        %543 = vmatpush.msra.mxu0 %v300
        %544 = vmatpush.msra.mxu0 %v296
        %545 = vmatpush.msra.mxu0 %v292
        %546 = vmatpush.msra.mxu0 %v288
        %547 = vmatpush.msra.mxu0 %v284
        %548 = vmatpush.msra.mxu0 %v280
        %549 = vmatpush.msra.mxu0 %v276
        %550 = vmatpush.msra.mxu0 %v272
        %551 = vmatmul.f32.gmra.mxu0 %v265
        %v552 = vpop.f32.mrf.mxu0
        %v553 = vadd.f32 0.0, %v552
        %554 = vmatmul.f32.gmra.mxu0 %v267
        %v555 = vpop.f32.mrf.mxu0
        %v556 = vadd.f32 0.0, %v555
        %557 = vdwg.mxu0
        %558 = vmatpush.msra.mxu0 %v396
        %559 = vmatpush.msra.mxu0 %v392
        %560 = vmatpush.msra.mxu0 %v388
        %561 = vmatpush.msra.mxu0 %v384
        %562 = vmatpush.msra.mxu0 %v380
        %563 = vmatpush.msra.mxu0 %v376
        %564 = vmatpush.msra.mxu0 %v372
        %565 = vmatpush.msra.mxu0 %v368
        %566 = vmatpush.msra.mxu0 %v364
        %567 = vmatpush.msra.mxu0 %v360
        %568 = vmatpush.msra.mxu0 %v356
        %569 = vmatpush.msra.mxu0 %v352
        %570 = vmatpush.msra.mxu0 %v348
        %571 = vmatpush.msra.mxu0 %v344
        %572 = vmatpush.msra.mxu0 %v340
        %573 = vmatpush.msra.mxu0 %v336
        %574 = vmatmul.f32.gmra.mxu0 %v266
        %v575 = vpop.f32.mrf.mxu0
        %v576 = vadd.f32 %v553, %v575
        %577 = vmatmul.f32.gmra.mxu0 %v268
        %v578 = vpop.f32.mrf.mxu0
        %v579 = vadd.f32 %v556, %v578
        %580 = vdwg.mxu0
        %v581 = vxor.u32 %v438, 2147483648
        %v582 = vxor.u32 %v484, 2147483648
        %v583 = vxor.u32 %v441, 2147483648
        %v584 = vxor.u32 %v487, 2147483648
        %v585 = vmul.f32 %v581, 1.442695
        %v586 = vpow.pop %v585
        %v587 = vmul.f32 %v582, 1.442695
        %v588 = vpow.pop %v587
        %v589 = vmul.f32 %v583, 1.442695
        %v590 = vpow.pop %v589
        %v591 = vmul.f32 %v584, 1.442695
        %v592 = vpow.pop %v591
        %v593 = vadd.f32 %v586, 1.0
        %v594 = vadd.f32 %v588, 1.0
        %v595 = vadd.f32 %v590, 1.0
        %v596 = vadd.f32 %v592, 1.0
        %v597 = vrcp.pop %v593
        %v598 = vmul.f32 %v593, %v597
        %v599 = vsub.f32 1.0, %v598
        %v600 = vmul.f32 %v597, %v599
        %v601 = vadd.f32 %v597, %v600
        %vm602 = vweird.f32 %v593
        %vm603 = vweird.f32 %v597
        %vm604 = vmor %vm602, %vm603
        %v605 = vsel %vm604, %v597, %v601
        %v606 = vand.u32 2147483647, %v593
        %vm607 = vcmp.eq.f32.partialorder %v606, 8.507059e+37
        %v608 = vand.u32 %v593, 2147483648
        %v609 = vor.u32 1.1754944e-38, %v608
        %v610 = vsel %vm607, %v609, %v605
        %v611 = vmul.f32 1.0, %v610
        %v612 = vrcp.pop %v594
        %v613 = vmul.f32 %v594, %v612
        %v614 = vsub.f32 1.0, %v613
        %v615 = vmul.f32 %v612, %v614
        %v616 = vadd.f32 %v612, %v615
        %vm617 = vweird.f32 %v594
        %vm618 = vweird.f32 %v612
        %vm619 = vmor %vm617, %vm618
        %v620 = vsel %vm619, %v612, %v616
        %v621 = vand.u32 2147483647, %v594
        %vm622 = vcmp.eq.f32.partialorder %v621, 8.507059e+37
        %v623 = vand.u32 %v594, 2147483648
        %v624 = vor.u32 1.1754944e-38, %v623
        %v625 = vsel %vm622, %v624, %v620
        %v626 = vmul.f32 1.0, %v625
        %v627 = vrcp.pop %v595
        %v628 = vmul.f32 %v595, %v627
        %v629 = vsub.f32 1.0, %v628
        %v630 = vmul.f32 %v627, %v629
        %v631 = vadd.f32 %v627, %v630
        %vm632 = vweird.f32 %v595
        %vm633 = vweird.f32 %v627
        %vm634 = vmor %vm632, %vm633
        %v635 = vsel %vm634, %v627, %v631
        %v636 = vand.u32 2147483647, %v595
        %vm637 = vcmp.eq.f32.partialorder %v636, 8.507059e+37
        %v638 = vand.u32 %v595, 2147483648
        %v639 = vor.u32 1.1754944e-38, %v638
        %v640 = vsel %vm637, %v639, %v635
        %v641 = vmul.f32 1.0, %v640
        %v642 = vrcp.pop %v596
        %v643 = vmul.f32 %v596, %v642
        %v644 = vsub.f32 1.0, %v643
        %v645 = vmul.f32 %v642, %v644
        %v646 = vadd.f32 %v642, %v645
        %vm647 = vweird.f32 %v596
        %vm648 = vweird.f32 %v642
        %vm649 = vmor %vm647, %vm648
        %v650 = vsel %vm649, %v642, %v646
        %v651 = vand.u32 2147483647, %v596
        %vm652 = vcmp.eq.f32.partialorder %v651, 8.507059e+37
        %v653 = vand.u32 %v596, 2147483648
        %v654 = vor.u32 1.1754944e-38, %v653
        %v655 = vsel %vm652, %v654, %v650
        %v656 = vmul.f32 1.0, %v655
        %v657 = vmul.f32 %v438, %v611
        %v658 = vmul.f32 %v484, %v626
        %v659 = vmul.f32 %v441, %v641
        %v660 = vmul.f32 %v487, %v656
        %v661 = vmul.f32 %v657, %v530
        %v662 = vmul.f32 %v658, %v576
        %v663 = vmul.f32 %v659, %v533
        %v664 = vmul.f32 %v660, %v579
        %v665 = vld [vmem:[%s238] sm:$0xff]
        %v666 = vld [vmem:[%s238 + $0x8] sm:$0xff]
        %v667 = vld [vmem:[%s238 + $0x10] sm:$0xff]
        %v668 = vld [vmem:[%s238 + $0x18] sm:$0xff]
        %v669 = vld [vmem:[%s238 + $0x20] sm:$0xff]
        %v670 = vld [vmem:[%s238 + $0x28] sm:$0xff]
        %v671 = vld [vmem:[%s238 + $0x30] sm:$0xff]
        %v672 = vld [vmem:[%s238 + $0x38] sm:$0xff]
        %v673 = vld [vmem:[%s238 + $0x40] sm:$0xff]
        %v674 = vld [vmem:[%s238 + $0x48] sm:$0xff]
        %v675 = vld [vmem:[%s238 + $0x50] sm:$0xff]
        %v676 = vld [vmem:[%s238 + $0x58] sm:$0xff]
        %v677 = vld [vmem:[%s238 + $0x60] sm:$0xff]
        %v678 = vld [vmem:[%s238 + $0x68] sm:$0xff]
        %v679 = vld [vmem:[%s238 + $0x70] sm:$0xff]
        %v680 = vld [vmem:[%s238 + $0x78] sm:$0xff]
        %v681 = vld [vmem:[%s238 + $0x80] sm:$0xff]
        %v682 = vld [vmem:[%s238 + $0x88] sm:$0xff]
        %v683 = vld [vmem:[%s238 + $0x90] sm:$0xff]
        %v684 = vld [vmem:[%s238 + $0x98] sm:$0xff]
        %v685 = vld [vmem:[%s238 + $0xa0] sm:$0xff]
        %v686 = vld [vmem:[%s238 + $0xa8] sm:$0xff]
        %v687 = vld [vmem:[%s238 + $0xb0] sm:$0xff]
        %v688 = vld [vmem:[%s238 + $0xb8] sm:$0xff]
        %v689 = vld [vmem:[%s238 + $0xc0] sm:$0xff]
        %v690 = vld [vmem:[%s238 + $0xc8] sm:$0xff]
        %v691 = vld [vmem:[%s238 + $0xd0] sm:$0xff]
        %v692 = vld [vmem:[%s238 + $0xd8] sm:$0xff]
        %v693 = vld [vmem:[%s238 + $0xe0] sm:$0xff]
        %v694 = vld [vmem:[%s238 + $0xe8] sm:$0xff]
        %v695 = vld [vmem:[%s238 + $0xf0] sm:$0xff]
        %v696 = vld [vmem:[%s238 + $0xf8] sm:$0xff]
        %v697 = vld [vmem:[%s238 + $0x100] sm:$0xff]
        %v698 = vld [vmem:[%s238 + $0x108] sm:$0xff]
        %v699 = vld [vmem:[%s238 + $0x110] sm:$0xff]
        %v700 = vld [vmem:[%s238 + $0x118] sm:$0xff]
        %v701 = vld [vmem:[%s238 + $0x120] sm:$0xff]
        %v702 = vld [vmem:[%s238 + $0x128] sm:$0xff]
        %v703 = vld [vmem:[%s238 + $0x130] sm:$0xff]
        %v704 = vld [vmem:[%s238 + $0x138] sm:$0xff]
        %v705 = vld [vmem:[%s238 + $0x140] sm:$0xff]
        %v706 = vld [vmem:[%s238 + $0x148] sm:$0xff]
        %v707 = vld [vmem:[%s238 + $0x150] sm:$0xff]
        %v708 = vld [vmem:[%s238 + $0x158] sm:$0xff]
        %v709 = vld [vmem:[%s238 + $0x160] sm:$0xff]
        %v710 = vld [vmem:[%s238 + $0x168] sm:$0xff]
        %v711 = vld [vmem:[%s238 + $0x170] sm:$0xff]
        %v712 = vld [vmem:[%s238 + $0x178] sm:$0xff]
        %v713 = vld [vmem:[%s238 + $0x180] sm:$0xff]
        %v714 = vld [vmem:[%s238 + $0x188] sm:$0xff]
        %v715 = vld [vmem:[%s238 + $0x190] sm:$0xff]
        %v716 = vld [vmem:[%s238 + $0x198] sm:$0xff]
        %v717 = vld [vmem:[%s238 + $0x1a0] sm:$0xff]
        %v718 = vld [vmem:[%s238 + $0x1a8] sm:$0xff]
        %v719 = vld [vmem:[%s238 + $0x1b0] sm:$0xff]
        %v720 = vld [vmem:[%s238 + $0x1b8] sm:$0xff]
        %v721 = vld [vmem:[%s238 + $0x1c0] sm:$0xff]
        %v722 = vld [vmem:[%s238 + $0x1c8] sm:$0xff]
        %v723 = vld [vmem:[%s238 + $0x1d0] sm:$0xff]
        %v724 = vld [vmem:[%s238 + $0x1d8] sm:$0xff]
        %v725 = vld [vmem:[%s238 + $0x1e0] sm:$0xff]
        %v726 = vld [vmem:[%s238 + $0x1e8] sm:$0xff]
        %v727 = vld [vmem:[%s238 + $0x1f0] sm:$0xff]
        %v728 = vld [vmem:[%s238 + $0x1f8] sm:$0xff]
        %729 = vmatpush.msra.mxu0 %v695
        %730 = vmatpush.msra.mxu0 %v693
        %731 = vmatpush.msra.mxu0 %v691
        %732 = vmatpush.msra.mxu0 %v689
        %733 = vmatpush.msra.mxu0 %v687
        %734 = vmatpush.msra.mxu0 %v685
        %735 = vmatpush.msra.mxu0 %v683
        %736 = vmatpush.msra.mxu0 %v681
        %737 = vmatpush.msra.mxu0 %v679
        %738 = vmatpush.msra.mxu0 %v677
        %739 = vmatpush.msra.mxu0 %v675
        %740 = vmatpush.msra.mxu0 %v673
        %741 = vmatpush.msra.mxu0 %v671
        %742 = vmatpush.msra.mxu0 %v669
        %743 = vmatpush.msra.mxu0 %v667
        %744 = vmatpush.msra.mxu0 %v665
        %745 = vmatmul.f32.gmra.mxu0 %v661
        %v746 = vpop.f32.mrf.mxu0
        %v747 = vadd.f32 0.0, %v746
        %748 = vmatmul.f32.gmra.mxu0 %v663
        %v749 = vpop.f32.mrf.mxu0
        %v750 = vadd.f32 0.0, %v749
        %751 = vdwg.mxu0
        %752 = vmatpush.msra.mxu0 %v727
        %753 = vmatpush.msra.mxu0 %v725
        %754 = vmatpush.msra.mxu0 %v723
        %755 = vmatpush.msra.mxu0 %v721
        %756 = vmatpush.msra.mxu0 %v719
        %757 = vmatpush.msra.mxu0 %v717
        %758 = vmatpush.msra.mxu0 %v715
        %759 = vmatpush.msra.mxu0 %v713
        %760 = vmatpush.msra.mxu0 %v711
        %761 = vmatpush.msra.mxu0 %v709
        %762 = vmatpush.msra.mxu0 %v707
        %763 = vmatpush.msra.mxu0 %v705
        %764 = vmatpush.msra.mxu0 %v703
        %765 = vmatpush.msra.mxu0 %v701
        %766 = vmatpush.msra.mxu0 %v699
        %767 = vmatpush.msra.mxu0 %v697
        %768 = vmatmul.f32.gmra.mxu0 %v662
        %v769 = vpop.f32.mrf.mxu0
        %v770 = vadd.f32 %v747, %v769
        %771 = vmatmul.f32.gmra.mxu0 %v664
        %v772 = vpop.f32.mrf.mxu0
        %v773 = vadd.f32 %v750, %v772
        %774 = vdwg.mxu0
        %775 = vmatpush.msra.mxu0 %v696
        %776 = vmatpush.msra.mxu0 %v694
        %777 = vmatpush.msra.mxu0 %v692
        %778 = vmatpush.msra.mxu0 %v690
        %779 = vmatpush.msra.mxu0 %v688
        %780 = vmatpush.msra.mxu0 %v686
        %781 = vmatpush.msra.mxu0 %v684
        %782 = vmatpush.msra.mxu0 %v682
        %783 = vmatpush.msra.mxu0 %v680
        %784 = vmatpush.msra.mxu0 %v678
        %785 = vmatpush.msra.mxu0 %v676
        %786 = vmatpush.msra.mxu0 %v674
        %787 = vmatpush.msra.mxu0 %v672
        %788 = vmatpush.msra.mxu0 %v670
        %789 = vmatpush.msra.mxu0 %v668
        %790 = vmatpush.msra.mxu0 %v666
        %791 = vmatmul.f32.gmra.mxu0 %v661
        %v792 = vpop.f32.mrf.mxu0
        %v793 = vadd.f32 0.0, %v792
        %794 = vmatmul.f32.gmra.mxu0 %v663
        %v795 = vpop.f32.mrf.mxu0
        %v796 = vadd.f32 0.0, %v795
        %797 = vdwg.mxu0
        %798 = vmatpush.msra.mxu0 %v728
        %799 = vmatpush.msra.mxu0 %v726
        %800 = vmatpush.msra.mxu0 %v724
        %801 = vmatpush.msra.mxu0 %v722
        %802 = vmatpush.msra.mxu0 %v720
        %803 = vmatpush.msra.mxu0 %v718
        %804 = vmatpush.msra.mxu0 %v716
        %805 = vmatpush.msra.mxu0 %v714
        %806 = vmatpush.msra.mxu0 %v712
        %807 = vmatpush.msra.mxu0 %v710
        %808 = vmatpush.msra.mxu0 %v708
        %809 = vmatpush.msra.mxu0 %v706
        %810 = vmatpush.msra.mxu0 %v704
        %811 = vmatpush.msra.mxu0 %v702
        %812 = vmatpush.msra.mxu0 %v700
        %813 = vmatpush.msra.mxu0 %v698
        %814 = vmatmul.f32.gmra.mxu0 %v662
        %v815 = vpop.f32.mrf.mxu0
        %v816 = vadd.f32 %v793, %v815
        %817 = vmatmul.f32.gmra.mxu0 %v664
        %v818 = vpop.f32.mrf.mxu0
        %v819 = vadd.f32 %v796, %v818
        %820 = vdwg.mxu0
        %p821 = scmp.eq.s32.totalorder %s24, 0
        // Predicated region
        $region45: #{tpu_custom_call.1} parent=31 // pred_check
          %p822 = pneg %p821
        $region46: #{tpu_custom_call.1} parent=31 // pred_check_branch
          %824 = sbr.rel (%p822) target = $region48
        $region47: #{tpu_custom_call.1} parent=31 // pred_region
          %825 = vst [vmem:[#allocation2] sm:$0xff] %v770
          %826 = vst [vmem:[#allocation2 + $0x8] sm:$0xff] %v816
          %827 = vst [vmem:[#allocation2 + $0x10] sm:$0xff] %v773
          %828 = vst [vmem:[#allocation2 + $0x18] sm:$0xff] %v819
        $region48: #{tpu_custom_call.1} parent=31 // pred_fallthru
          _
        %p829 = scmp.gt.s32.totalorder %s24, 0
        %p830 = scmp.lt.s32.totalorder %s24, 1
        %p831 = pnand %p829, %p830
        %p832 = pneg %p831
        // Predicated region
        $region49: #{tpu_custom_call.1} parent=31 // pred_check
          _
        $region50: #{tpu_custom_call.1} parent=31 // pred_check_branch
          %834 = sbr.rel (%p831) target = $region52
        $region51: #{tpu_custom_call.1} parent=31 // pred_region
          %v835 = vld [vmem:[#allocation2] sm:$0xff]
          %v836 = vld [vmem:[#allocation2 + $0x8] sm:$0xff]
          %v837 = vld [vmem:[#allocation2 + $0x10] sm:$0xff]
          %v838 = vld [vmem:[#allocation2 + $0x18] sm:$0xff]
          %v839 = vadd.f32 %v835, %v770
          %v840 = vadd.f32 %v836, %v816
          %v841 = vadd.f32 %v837, %v773
          %v842 = vadd.f32 %v838, %v819
          %843 = vst [vmem:[#allocation2] sm:$0xff] %v839
          %844 = vst [vmem:[#allocation2 + $0x8] sm:$0xff] %v840
          %845 = vst [vmem:[#allocation2 + $0x10] sm:$0xff] %v841
          %846 = vst [vmem:[#allocation2 + $0x18] sm:$0xff] %v842
        $region52: #{tpu_custom_call.1} parent=31 // pred_fallthru
          _
        %p847 = scmp.eq.s32.totalorder %s24, 1
        // Predicated region
        $region53: #{tpu_custom_call.1} parent=31 // pred_check
          %p848 = pneg %p847
        $region54: #{tpu_custom_call.1} parent=31 // pred_check_branch
          %850 = sbr.rel (%p848) target = $region56
        $region55: #{tpu_custom_call.1} parent=31 // pred_region
          %v851 = vld [vmem:[#allocation2] sm:$0xff]
          %v852 = vld [vmem:[#allocation2 + $0x8] sm:$0xff]
          %v853 = vld [vmem:[#allocation2 + $0x10] sm:$0xff]
          %v854 = vld [vmem:[#allocation2 + $0x18] sm:$0xff]
          %v855 = vadd.f32 %v851, %v770
          %v856 = vadd.f32 %v852, %v816
          %v857 = vadd.f32 %v853, %v773
          %v858 = vadd.f32 %v854, %v819
          %859 = vst [vmem:[#allocation9] sm:$0xff] %v855
          %860 = vst [vmem:[#allocation9 + $0x8] sm:$0xff] %v856
          %861 = vst [vmem:[#allocation9 + $0x10] sm:$0xff] %v857
          %862 = vst [vmem:[#allocation9 + $0x18] sm:$0xff] %v858
        $region56: #{tpu_custom_call.1} parent=31 // pred_fallthru
          _
        // Predicated region
        $region57: #{tpu_custom_call.1} parent=31 // pred_check
          %p863 = pneg %p127
        $region58: #{tpu_custom_call.1} parent=31 // pred_check_branch
          %865 = sbr.rel (%p863) target = $region60
        $region59: #{tpu_custom_call.1} parent=31 // pred_region
          %s866 = smul.u32 2, %s23
          %868 = vsyncadd [#allocation5], 0
          %s869 = smul.addr %s866, 2
          %s870 = smul.addr %s869, 8
          %s871 = scalar_lea.hbm %s3, %s870
          %s872 = sshll.u32 [#allocation9], 4
          %s873 = int_to_ptr.vmem [resolvable:$true] %s872
          %s874 = sshll.u32 %s871, 4
          %s875 = int_to_ptr.hbm [resolvable:$true] %s874
          %880 = dma.vmem_to_hbm [thread:$0]  %s873, 512, %s875, [#allocation5], 256, 256, 16
        $region60: #{tpu_custom_call.1} parent=31 // pred_fallthru
          _
        // Predicated region
        $region61: #{tpu_custom_call.1} parent=31 // pred_check
          %p881 = pneg %p127
        $region62: #{tpu_custom_call.1} parent=31 // pred_check_branch
          %883 = sbr.rel (%p881) target = $region64
        $region63: #{tpu_custom_call.1} parent=31 // pred_region
          %885 = dma.done [#allocation5], 512
        $region64: #{tpu_custom_call.1} parent=31 // pred_fallthru
          _
      $region32: #{tpu_custom_call.1} parent=5 // pred_fallthru
        _
      %p886 = scmp.le.s32.totalorder 2, %s14
      // Predicated region
      $region65: #{tpu_custom_call.1} parent=5 // pred_check
        %p887 = pneg %p886
      $region66: #{tpu_custom_call.1} parent=5 // pred_check_branch
        %889 = sbr.rel (%p887) target = $region68
      $region67: #{tpu_custom_call.1} parent=5 // pred_region
        %s890 = ssub.s32 %s14, 2
      $region68: #{tpu_custom_call.1} parent=5 // pred_fallthru
        _
    $region6: #{tpu_custom_call.1} parent=1 // loop_footer
      %s18 = sadd.s32 1, %s14
    $region7: #{tpu_custom_call.1} parent=1 // loop_footer_branch
      %13 = sbr.rel target = $region3
    $region8: #{tpu_custom_call.1} parent=1 // loop_exit
      _
    %891 = vsyncpa [#allocation4], 1
    %s892 = scalar_lea.sflag [#allocation4], 1
    %893 = vsyncpa %s892, 1
    %894 = vsyncpa [#allocation7], 1
    %s895 = scalar_lea.sflag [#allocation7], 1
    %896 = vsyncpa %s895, 1
    %897 = vsyncpa [#allocation5], 1
    %s898 = scalar_lea.sflag [#allocation5], 1
    %899 = vsyncpa %s898, 1

</llo_original>
